<compile_context>
chip_gen: v5e
topology: v5e:2x2
jax: 0.10.0
libtpu: 0.0.40
codegen_flags: <defaults>
</compile_context>

<pallas_src>
import jax
import jax.numpy as jnp
from jax import lax
from jax.experimental import pallas as pl
from jax.experimental.pallas import tpu as pltpu

# ----------------------------- config (small, deterministic) -----------------
BATCH = 2
SEQ = 8
DIM = 32
HEADS = 8
DIM_INNER = 32                      # dim_inner == dim -> to_out is Identity
HEAD_DIM = DIM_INNER // HEADS       # 4
EXP = HEAD_DIM * DIM_INNER          # 128 expanded lane width (one full vreg of lanes)
EPS = 1e-12                         # F.normalize default eps
SCALE = DIM ** 0.5                  # RMSNorm scale


# =============================================================================
# The single fused kernel: RMSNorm + projection + gate + recurrence
# =============================================================================
def fused_kernel(x_ref, gamma_ref, w_ref, b_ref, out_ref, oacc_ref):
    # x_ref: (SEQ*BATCH, DIM) in time-major row order, r = t*BATCH + b.
    x = x_ref[...]
    norm = jnp.sqrt(jnp.sum(x * x, axis=-1, keepdims=True))
    xn = x / jnp.maximum(norm, EPS)                     # F.normalize(x, dim=-1)
    xn = xn * SCALE * gamma_ref[...]                    # * sqrt(dim) * gamma  (RMSNorm)
    out_ref[:, 0:DIM] = xn                              # RMSNorm output (the named spec)

    # One fused MXU matmul.  Columns (all 128-lane aligned blocks):
    #   [ q_exp | k_exp | v_tiled | a_re_exp | a_im_exp ]   (5 * EXP = 640 cols)
    # where the d-expansion / lane tiling was folded into the weight at init.
    y = jnp.dot(xn, w_ref[...], preferred_element_type=jnp.float32) + b_ref[...]
    q_e = y[:, 0 * EXP:1 * EXP]                         # (NB, 128)
    k_e = y[:, 1 * EXP:2 * EXP]
    v_t = y[:, 2 * EXP:3 * EXP]
    a_re = y[:, 3 * EXP:4 * EXP]
    a_im = y[:, 4 * EXP:5 * EXP]

    # gate = Re(polar(sigmoid(|a|), angle(a))), elementwise on the expanded lanes
    mag = jnp.sqrt(a_re * a_re + a_im * a_im)
    safe = jnp.where(mag > 0, mag, 1.0)
    cosph = jnp.where(mag > 0, a_re / safe, 1.0)        # cos(angle(a)); angle(0) = 0
    g_e = jax.nn.sigmoid(mag) * cosph                   # (NB, 128) expanded gate

    # Sequential recurrence, vectorized over (batch, head, d, e):
    #   state[b, d*DIM_INNER + h*HEAD_DIM + e] = S[b, h, d, e]
    # Time loop fully unrolled (SEQ static); body is VPU-elementwise only.
    state = jnp.zeros((BATCH, EXP), jnp.float32)
    for t in range(SEQ):
        r0 = t * BATCH
        r1 = r0 + BATCH
        state = g_e[r0:r1, :] * state + k_e[r0:r1, :] * v_t[r0:r1, :]
        oacc_ref[r0:r1, :] = q_e[r0:r1, :] * state      # per-timestep row-block store

    # Reduce over the HEAD_DIM lane blocks with one MXU matmul: (NB,128)@(128,32)
    lane = lax.broadcasted_iota(jnp.int32, (EXP, DIM_INNER), 0)
    col = lax.broadcasted_iota(jnp.int32, (EXP, DIM_INNER), 1)
    reduce_m = (lane % DIM_INNER == col).astype(jnp.float32)
    out_ref[:, DIM:DIM + DIM_INNER] = jnp.dot(
        oacc_ref[...], reduce_m, preferred_element_type=jnp.float32)


def fused_forward(x_tm, gamma, w_fused, b_fused):
    NB = SEQ * BATCH
    vmem = pl.BlockSpec(memory_space=pltpu.MemorySpace.VMEM)
    return pl.pallas_call(
        fused_kernel,
        out_shape=jax.ShapeDtypeStruct((NB, DIM + DIM_INNER), jnp.float32),
        in_specs=[vmem, vmem, vmem, vmem],
        out_specs=vmem,
        scratch_shapes=[pltpu.VMEM((NB, EXP), jnp.float32)],
    )(x_tm, gamma, w_fused, b_fused)


# =============================================================================
# Weight fusion / column expansion: done ONCE at init, outside the jitted path.
# All operations are exact column copies (gather / tile), no matmuls.
# =============================================================================
def fuse_params(params):
    gamma, wqkv_t, wa_t, ba = params
    DI, Dh = DIM_INNER, HEAD_DIM
    wq = wqkv_t[:, 0 * DI:1 * DI]
    wk = wqkv_t[:, 1 * DI:2 * DI]
    wv = wqkv_t[:, 2 * DI:3 * DI]
    # to_a column layout is (h d c) with c=2 -> de-interleave re/im
    wa_re, wa_im = wa_t[:, 0::2], wa_t[:, 1::2]
    ba_re, ba_im = ba[:, 0::2], ba[:, 1::2]

    # Expanded lane c = d*DI + h*Dh + e  <-  source column h*Dh + d
    c = jnp.arange(EXP)
    src = ((c % DI) // Dh) * Dh + (c // DI)

    w_fused = jnp.concatenate(
        [wq[:, src], wk[:, src], jnp.tile(wv, (1, Dh)), wa_re[:, src], wa_im[:, src]],
        axis=1)                                                    # (DIM, 5*EXP)
    b_fused = jnp.concatenate(
        [jnp.zeros((1, 3 * EXP), jnp.float32), ba_re[:, src], ba_im[:, src]],
        axis=1)                                                    # (1, 5*EXP)
    return gamma, w_fused, b_fused


# =============================================================================
# Forward wrapper (jitted): only free reshapes / tiny layout transposes outside
# the single Pallas call.
# =============================================================================
def gate_looped_attention(x, gamma, w_fused, b_fused):
    B, N, D = x.shape
    x_tm = x.transpose(1, 0, 2).reshape(N * B, D)        # time-major rows (r = t*B + b)
    slab = fused_forward(x_tm, gamma, w_fused, b_fused)  # (N*B, DIM + DIM_INNER)
    rms = slab[:, :D].reshape(N, B, D).transpose(1, 0, 2)
    out = slab[:, D:D + DIM_INNER].reshape(N, B, DIM_INNER).transpose(1, 0, 2)
    # to_out is Identity (dim_inner == dim); lane layout already 'b n (h d)'
    return out, rms


# =============================================================================
# Pure-JAX reference (correctness check of the Pallas path)
# =============================================================================
def reference(x, params):
    gamma, wqkv_t, wa_t, ba = params
    B, N, _ = x.shape
    H, Dh = HEADS, HEAD_DIM
    hi = lax.Precision.HIGHEST
    norm = jnp.sqrt(jnp.sum(x * x, axis=-1, keepdims=True))
    xn = x / jnp.maximum(norm, EPS) * SCALE * gamma.reshape(-1)
    qkv = jnp.dot(xn, wqkv_t, precision=hi)
    a = jnp.dot(xn, wa_t, precision=hi) + ba.reshape(-1)
    q, k, v = jnp.split(qkv, 3, axis=-1)

    def split_heads(t):
        return t.reshape(B, N, H, Dh).transpose(0, 2, 1, 3).reshape(B * H, N, Dh)

    q, k, v = map(split_heads, (q, k, v))
    a = a.reshape(B, N, H, Dh, 2)
    a_re = a[..., 0].transpose(0, 2, 1, 3).reshape(B * H, N, Dh)
    a_im = a[..., 1].transpose(0, 2, 1, 3).reshape(B * H, N, Dh)
    mag = jnp.sqrt(a_re ** 2 + a_im ** 2)
    gate = jax.nn.sigmoid(mag) * jnp.where(mag > 0, a_re / jnp.where(mag > 0, mag, 1.0), 1.0)

    kv = jnp.einsum('bnd,bne->bnde', k, v, precision=hi)

    def step(s, inp):
        g_t, kv_t = inp
        s = g_t[..., None] * s + kv_t
        return s, s

    init = jnp.zeros((B * H, Dh, Dh), jnp.float32)
    _, kvs = lax.scan(step, init, (gate.transpose(1, 0, 2), kv.transpose(1, 0, 2, 3)))
    kvs = kvs.transpose(1, 0, 2, 3)
    out = jnp.einsum('bnd,bnde->bne', q, kvs, precision=hi)
    out = out.reshape(B, H, N, Dh).transpose(0, 2, 1, 3).reshape(B, N, H * Dh)
    return out, xn


# =============================================================================
if __name__ == "__main__":
    key = jax.random.PRNGKey(0)
    kx, kw1, kw2, kb = jax.random.split(key, 4)

    x = jax.random.normal(kx, (BATCH, SEQ, DIM), jnp.float32)

    # deterministic parameter init (PyTorch Linear-style uniform bounds)
    gamma = jnp.ones((1, DIM), jnp.float32)                       # RMSNorm.gamma = ones
    bound = 1.0 / (DIM ** 0.5)
    wqkv_t = jax.random.uniform(kw1, (DIM, 3 * DIM_INNER), jnp.float32, -bound, bound)
    wa_t = jax.random.uniform(kw2, (DIM, 2 * DIM_INNER), jnp.float32, -bound, bound)
    ba = jax.random.uniform(kb, (1, 2 * DIM_INNER), jnp.float32, -bound, bound)
    params = (gamma, wqkv_t, wa_t, ba)

    # weight fusion precomputed once at init (NOT inside the jitted forward)
    gamma_f, w_fused, b_fused = fuse_params(params)
    gamma_f, w_fused, b_fused = jax.block_until_ready((gamma_f, w_fused, b_fused))

    fwd = jax.jit(gate_looped_attention)
    out, rms = fwd(x, gamma_f, w_fused, b_fused)
    out = jax.block_until_ready(out)

    ref_out, ref_rms = reference(x, params)
    assert out.shape == (BATCH, SEQ, DIM_INNER), out.shape
    assert jnp.allclose(rms, ref_rms, rtol=1e-5, atol=1e-5), \
        float(jnp.max(jnp.abs(rms - ref_rms)))
    assert jnp.allclose(out, ref_out, rtol=1e-4, atol=1e-4), \
        float(jnp.max(jnp.abs(out - ref_out)))

    print("KERNEL_OK")
</pallas_src>

<mosaic_0001>
module attributes {stable_mosaic.version = 11 : i64} {
  func.func @fused_kernel(%arg0: memref<16x32xf32, #tpu.memory_space<vmem>>, %arg1: memref<1x32xf32, #tpu.memory_space<vmem>>, %arg2: memref<32x640xf32, #tpu.memory_space<vmem>>, %arg3: memref<1x640xf32, #tpu.memory_space<vmem>>, %arg4: memref<16x64xf32, #tpu.memory_space<vmem>>, %arg5: memref<16x128xf32, #tpu.memory_space<vmem>>) attributes {dimension_semantics = [], scalar_prefetch = 0 : i64, scratch_operands = 1 : i64, tpu.core_type = #tpu.core_type<tc>} {
    %c0 = arith.constant 0 : index
    %c0_0 = arith.constant 0 : index
    %0 = vector.load %arg0[%c0, %c0_0] : memref<16x32xf32, #tpu.memory_space<vmem>>, vector<16x32xf32>
    %1 = arith.mulf %0, %0 : vector<16x32xf32>
    %cst = arith.constant dense<0.000000e+00> : vector<16xf32>
    %2 = vector.multi_reduction <add>, %1, %cst [1] : vector<16x32xf32> to vector<16xf32>
    %3 = vector.shape_cast %2 : vector<16xf32> to vector<16x1xf32>
    %4 = math.sqrt %3 : vector<16x1xf32>
    %cst_1 = arith.constant 9.99999996E-13 : f32
    %5 = vector.broadcast %cst_1 : f32 to vector<16x1xf32>
    %6 = arith.maximumf %4, %5 : vector<16x1xf32>
    %7 = vector.broadcast %6 : vector<16x1xf32> to vector<16x32xf32>
    %8 = arith.divf %0, %7 : vector<16x32xf32>
    %cst_2 = arith.constant 5.65685415 : f32
    %9 = vector.broadcast %cst_2 : f32 to vector<16x32xf32>
    %10 = arith.mulf %8, %9 : vector<16x32xf32>
    %c0_3 = arith.constant 0 : index
    %c0_4 = arith.constant 0 : index
    %11 = vector.load %arg1[%c0_3, %c0_4] : memref<1x32xf32, #tpu.memory_space<vmem>>, vector<1x32xf32>
    %12 = vector.broadcast %11 : vector<1x32xf32> to vector<16x32xf32>
    %13 = arith.mulf %10, %12 : vector<16x32xf32>
    %c0_5 = arith.constant 0 : index
    %c0_6 = arith.constant 0 : index
    %14 = vector.load %arg4[%c0_5, %c0_6] : memref<16x64xf32, #tpu.memory_space<vmem>>, vector<16x32xf32>
    tpu.vector_store %arg4[%c0_5, %c0_6], %13 {strides = array<i32>} : memref<16x64xf32, #tpu.memory_space<vmem>>, vector<16x32xf32>,
    %c0_7 = arith.constant 0 : index
    %c0_8 = arith.constant 0 : index
    %15 = vector.load %arg2[%c0_7, %c0_8] : memref<32x640xf32, #tpu.memory_space<vmem>>, vector<32x640xf32>
    %cst_9 = arith.constant dense<0.000000e+00> : vector<16x640xf32>
    %16 = tpu.matmul %13, %15, %cst_9 {dimension_numbers = #tpu.dot_dimension_numbers<[1], [0], [0], [1], [0, 0, 1, 1], [], []>} : vector<16x32xf32>, vector<32x640xf32>, vector<16x640xf32> -> vector<16x640xf32>
    %c0_10 = arith.constant 0 : index
    %c0_11 = arith.constant 0 : index
    %17 = vector.load %arg3[%c0_10, %c0_11] : memref<1x640xf32, #tpu.memory_space<vmem>>, vector<1x640xf32>
    %18 = vector.broadcast %17 : vector<1x640xf32> to vector<16x640xf32>
    %19 = arith.addf %16, %18 : vector<16x640xf32>
    %20 = vector.extract_strided_slice %19 {offsets = [0, 0], sizes = [16, 128], strides = [1, 1]} : vector<16x640xf32> to vector<16x128xf32>
    %21 = vector.extract_strided_slice %19 {offsets = [0, 128], sizes = [16, 128], strides = [1, 1]} : vector<16x640xf32> to vector<16x128xf32>
    %22 = vector.extract_strided_slice %19 {offsets = [0, 256], sizes = [16, 128], strides = [1, 1]} : vector<16x640xf32> to vector<16x128xf32>
    %23 = vector.extract_strided_slice %19 {offsets = [0, 384], sizes = [16, 128], strides = [1, 1]} : vector<16x640xf32> to vector<16x128xf32>
    %24 = vector.extract_strided_slice %19 {offsets = [0, 512], sizes = [16, 128], strides = [1, 1]} : vector<16x640xf32> to vector<16x128xf32>
    %25 = arith.mulf %23, %23 : vector<16x128xf32>
    %26 = arith.mulf %24, %24 : vector<16x128xf32>
    %27 = arith.addf %25, %26 : vector<16x128xf32>
    %28 = math.sqrt %27 : vector<16x128xf32>
    %cst_12 = arith.constant 0.000000e+00 : f32
    %29 = vector.broadcast %cst_12 : f32 to vector<16x128xf32>
    %30 = arith.cmpf ogt, %28, %29 : vector<16x128xf32>
    %cst_13 = arith.constant 1.000000e+00 : f32
    %31 = vector.broadcast %cst_13 : f32 to vector<16x128xf32>
    %32 = arith.select %30, %28, %31 : vector<16x128xi1>, vector<16x128xf32>
    %cst_14 = arith.constant 0.000000e+00 : f32
    %33 = vector.broadcast %cst_14 : f32 to vector<16x128xf32>
    %34 = arith.cmpf ogt, %28, %33 : vector<16x128xf32>
    %35 = arith.divf %23, %32 : vector<16x128xf32>
    %cst_15 = arith.constant 1.000000e+00 : f32
    %36 = vector.broadcast %cst_15 : f32 to vector<16x128xf32>
    %37 = arith.select %34, %35, %36 : vector<16x128xi1>, vector<16x128xf32>
    %38 = arith.negf %28 : vector<16x128xf32>
    %39 = math.exp %38 : vector<16x128xf32>
    %cst_16 = arith.constant 1.000000e+00 : f32
    %40 = vector.broadcast %cst_16 : f32 to vector<16x128xf32>
    %41 = arith.addf %40, %39 : vector<16x128xf32>
    %42 = arith.divf %40, %41 : vector<16x128xf32>
    %43 = arith.mulf %42, %37 : vector<16x128xf32>
    %cst_17 = arith.constant 0.000000e+00 : f32
    %44 = vector.broadcast %cst_17 : f32 to vector<2x128xf32>
    %45 = vector.extract_strided_slice %43 {offsets = [0, 0], sizes = [2, 128], strides = [1, 1]} : vector<16x128xf32> to vector<2x128xf32>
    %46 = arith.mulf %45, %44 : vector<2x128xf32>
    %47 = vector.extract_strided_slice %21 {offsets = [0, 0], sizes = [2, 128], strides = [1, 1]} : vector<16x128xf32> to vector<2x128xf32>
    %48 = vector.extract_strided_slice %22 {offsets = [0, 0], sizes = [2, 128], strides = [1, 1]} : vector<16x128xf32> to vector<2x128xf32>
    %49 = arith.mulf %47, %48 : vector<2x128xf32>
    %50 = arith.addf %46, %49 : vector<2x128xf32>
    %51 = vector.extract_strided_slice %20 {offsets = [0, 0], sizes = [2, 128], strides = [1, 1]} : vector<16x128xf32> to vector<2x128xf32>
    %52 = arith.mulf %51, %50 : vector<2x128xf32>
    %c0_18 = arith.constant 0 : index
    %c0_19 = arith.constant 0 : index
    %53 = vector.load %arg5[%c0_18, %c0_19] : memref<16x128xf32, #tpu.memory_space<vmem>>, vector<2x128xf32>
    tpu.vector_store %arg5[%c0_18, %c0_19], %52 {strides = array<i32>} : memref<16x128xf32, #tpu.memory_space<vmem>>, vector<2x128xf32>,
    %54 = vector.extract_strided_slice %43 {offsets = [2, 0], sizes = [2, 128], strides = [1, 1]} : vector<16x128xf32> to vector<2x128xf32>
    %55 = arith.mulf %54, %50 : vector<2x128xf32>
    %56 = vector.extract_strided_slice %21 {offsets = [2, 0], sizes = [2, 128], strides = [1, 1]} : vector<16x128xf32> to vector<2x128xf32>
    %57 = vector.extract_strided_slice %22 {offsets = [2, 0], sizes = [2, 128], strides = [1, 1]} : vector<16x128xf32> to vector<2x128xf32>
    %58 = arith.mulf %56, %57 : vector<2x128xf32>
    %59 = arith.addf %55, %58 : vector<2x128xf32>
    %60 = vector.extract_strided_slice %20 {offsets = [2, 0], sizes = [2, 128], strides = [1, 1]} : vector<16x128xf32> to vector<2x128xf32>
    %61 = arith.mulf %60, %59 : vector<2x128xf32>
    %c2 = arith.constant 2 : index
    %c0_20 = arith.constant 0 : index
    %62 = vector.load %arg5[%c2, %c0_20] : memref<16x128xf32, #tpu.memory_space<vmem>>, vector<2x128xf32>
    tpu.vector_store %arg5[%c2, %c0_20], %61 {strides = array<i32>} : memref<16x128xf32, #tpu.memory_space<vmem>>, vector<2x128xf32>,
    %63 = vector.extract_strided_slice %43 {offsets = [4, 0], sizes = [2, 128], strides = [1, 1]} : vector<16x128xf32> to vector<2x128xf32>
    %64 = arith.mulf %63, %59 : vector<2x128xf32>
    %65 = vector.extract_strided_slice %21 {offsets = [4, 0], sizes = [2, 128], strides = [1, 1]} : vector<16x128xf32> to vector<2x128xf32>
    %66 = vector.extract_strided_slice %22 {offsets = [4, 0], sizes = [2, 128], strides = [1, 1]} : vector<16x128xf32> to vector<2x128xf32>
    %67 = arith.mulf %65, %66 : vector<2x128xf32>
    %68 = arith.addf %64, %67 : vector<2x128xf32>
    %69 = vector.extract_strided_slice %20 {offsets = [4, 0], sizes = [2, 128], strides = [1, 1]} : vector<16x128xf32> to vector<2x128xf32>
    %70 = arith.mulf %69, %68 : vector<2x128xf32>
    %c4 = arith.constant 4 : index
    %c0_21 = arith.constant 0 : index
    %71 = vector.load %arg5[%c4, %c0_21] : memref<16x128xf32, #tpu.memory_space<vmem>>, vector<2x128xf32>
    tpu.vector_store %arg5[%c4, %c0_21], %70 {strides = array<i32>} : memref<16x128xf32, #tpu.memory_space<vmem>>, vector<2x128xf32>,
    %72 = vector.extract_strided_slice %43 {offsets = [6, 0], sizes = [2, 128], strides = [1, 1]} : vector<16x128xf32> to vector<2x128xf32>
    %73 = arith.mulf %72, %68 : vector<2x128xf32>
    %74 = vector.extract_strided_slice %21 {offsets = [6, 0], sizes = [2, 128], strides = [1, 1]} : vector<16x128xf32> to vector<2x128xf32>
    %75 = vector.extract_strided_slice %22 {offsets = [6, 0], sizes = [2, 128], strides = [1, 1]} : vector<16x128xf32> to vector<2x128xf32>
    %76 = arith.mulf %74, %75 : vector<2x128xf32>
    %77 = arith.addf %73, %76 : vector<2x128xf32>
    %78 = vector.extract_strided_slice %20 {offsets = [6, 0], sizes = [2, 128], strides = [1, 1]} : vector<16x128xf32> to vector<2x128xf32>
    %79 = arith.mulf %78, %77 : vector<2x128xf32>
    %c6 = arith.constant 6 : index
    %c0_22 = arith.constant 0 : index
    %80 = vector.load %arg5[%c6, %c0_22] : memref<16x128xf32, #tpu.memory_space<vmem>>, vector<2x128xf32>
    tpu.vector_store %arg5[%c6, %c0_22], %79 {strides = array<i32>} : memref<16x128xf32, #tpu.memory_space<vmem>>, vector<2x128xf32>,
    %81 = vector.extract_strided_slice %43 {offsets = [8, 0], sizes = [2, 128], strides = [1, 1]} : vector<16x128xf32> to vector<2x128xf32>
    %82 = arith.mulf %81, %77 : vector<2x128xf32>
    %83 = vector.extract_strided_slice %21 {offsets = [8, 0], sizes = [2, 128], strides = [1, 1]} : vector<16x128xf32> to vector<2x128xf32>
    %84 = vector.extract_strided_slice %22 {offsets = [8, 0], sizes = [2, 128], strides = [1, 1]} : vector<16x128xf32> to vector<2x128xf32>
    %85 = arith.mulf %83, %84 : vector<2x128xf32>
    %86 = arith.addf %82, %85 : vector<2x128xf32>
    %87 = vector.extract_strided_slice %20 {offsets = [8, 0], sizes = [2, 128], strides = [1, 1]} : vector<16x128xf32> to vector<2x128xf32>
    %88 = arith.mulf %87, %86 : vector<2x128xf32>
    %c8 = arith.constant 8 : index
    %c0_23 = arith.constant 0 : index
    %89 = vector.load %arg5[%c8, %c0_23] : memref<16x128xf32, #tpu.memory_space<vmem>>, vector<2x128xf32>
    tpu.vector_store %arg5[%c8, %c0_23], %88 {strides = array<i32>} : memref<16x128xf32, #tpu.memory_space<vmem>>, vector<2x128xf32>,
    %90 = vector.extract_strided_slice %43 {offsets = [10, 0], sizes = [2, 128], strides = [1, 1]} : vector<16x128xf32> to vector<2x128xf32>
    %91 = arith.mulf %90, %86 : vector<2x128xf32>
    %92 = vector.extract_strided_slice %21 {offsets = [10, 0], sizes = [2, 128], strides = [1, 1]} : vector<16x128xf32> to vector<2x128xf32>
    %93 = vector.extract_strided_slice %22 {offsets = [10, 0], sizes = [2, 128], strides = [1, 1]} : vector<16x128xf32> to vector<2x128xf32>
    %94 = arith.mulf %92, %93 : vector<2x128xf32>
    %95 = arith.addf %91, %94 : vector<2x128xf32>
    %96 = vector.extract_strided_slice %20 {offsets = [10, 0], sizes = [2, 128], strides = [1, 1]} : vector<16x128xf32> to vector<2x128xf32>
    %97 = arith.mulf %96, %95 : vector<2x128xf32>
    %c10 = arith.constant 10 : index
    %c0_24 = arith.constant 0 : index
    %98 = vector.load %arg5[%c10, %c0_24] : memref<16x128xf32, #tpu.memory_space<vmem>>, vector<2x128xf32>
    tpu.vector_store %arg5[%c10, %c0_24], %97 {strides = array<i32>} : memref<16x128xf32, #tpu.memory_space<vmem>>, vector<2x128xf32>,
    %99 = vector.extract_strided_slice %43 {offsets = [12, 0], sizes = [2, 128], strides = [1, 1]} : vector<16x128xf32> to vector<2x128xf32>
    %100 = arith.mulf %99, %95 : vector<2x128xf32>
    %101 = vector.extract_strided_slice %21 {offsets = [12, 0], sizes = [2, 128], strides = [1, 1]} : vector<16x128xf32> to vector<2x128xf32>
    %102 = vector.extract_strided_slice %22 {offsets = [12, 0], sizes = [2, 128], strides = [1, 1]} : vector<16x128xf32> to vector<2x128xf32>
    %103 = arith.mulf %101, %102 : vector<2x128xf32>
    %104 = arith.addf %100, %103 : vector<2x128xf32>
    %105 = vector.extract_strided_slice %20 {offsets = [12, 0], sizes = [2, 128], strides = [1, 1]} : vector<16x128xf32> to vector<2x128xf32>
    %106 = arith.mulf %105, %104 : vector<2x128xf32>
    %c12 = arith.constant 12 : index
    %c0_25 = arith.constant 0 : index
    %107 = vector.load %arg5[%c12, %c0_25] : memref<16x128xf32, #tpu.memory_space<vmem>>, vector<2x128xf32>
    tpu.vector_store %arg5[%c12, %c0_25], %106 {strides = array<i32>} : memref<16x128xf32, #tpu.memory_space<vmem>>, vector<2x128xf32>,
    %108 = vector.extract_strided_slice %43 {offsets = [14, 0], sizes = [2, 128], strides = [1, 1]} : vector<16x128xf32> to vector<2x128xf32>
    %109 = arith.mulf %108, %104 : vector<2x128xf32>
    %110 = vector.extract_strided_slice %21 {offsets = [14, 0], sizes = [2, 128], strides = [1, 1]} : vector<16x128xf32> to vector<2x128xf32>
    %111 = vector.extract_strided_slice %22 {offsets = [14, 0], sizes = [2, 128], strides = [1, 1]} : vector<16x128xf32> to vector<2x128xf32>
    %112 = arith.mulf %110, %111 : vector<2x128xf32>
    %113 = arith.addf %109, %112 : vector<2x128xf32>
    %114 = vector.extract_strided_slice %20 {offsets = [14, 0], sizes = [2, 128], strides = [1, 1]} : vector<16x128xf32> to vector<2x128xf32>
    %115 = arith.mulf %114, %113 : vector<2x128xf32>
    %c14 = arith.constant 14 : index
    %c0_26 = arith.constant 0 : index
    %116 = vector.load %arg5[%c14, %c0_26] : memref<16x128xf32, #tpu.memory_space<vmem>>, vector<2x128xf32>
    tpu.vector_store %arg5[%c14, %c0_26], %115 {strides = array<i32>} : memref<16x128xf32, #tpu.memory_space<vmem>>, vector<2x128xf32>,
    %117 = tpu.iota {dimensions = array<i32: 0>} : vector<128x32xi32>
    %118 = tpu.iota {dimensions = array<i32: 1>} : vector<128x32xi32>
    %c32_i32 = arith.constant 32 : i32
    %c0_i32 = arith.constant 0 : i32
    %119 = arith.cmpi eq, %c32_i32, %c0_i32 : i32
    %c1_i32 = arith.constant 1 : i32
    %120 = arith.select %119, %c1_i32, %c32_i32 : i32
    %121 = vector.broadcast %120 : i32 to vector<128x32xi32>
    %122 = arith.remsi %117, %121 : vector<128x32xi32>
    %c0_i32_27 = arith.constant 0 : i32
    %123 = vector.broadcast %c0_i32_27 : i32 to vector<128x32xi32>
    %124 = arith.cmpi ne, %122, %123 : vector<128x32xi32>
    %c0_i32_28 = arith.constant 0 : i32
    %125 = vector.broadcast %c0_i32_28 : i32 to vector<128x32xi32>
    %126 = arith.cmpi slt, %122, %125 : vector<128x32xi32>
    %c0_i32_29 = arith.constant 0 : i32
    %127 = arith.cmpi slt, %120, %c0_i32_29 : i32
    %128 = vector.broadcast %127 : i1 to vector<128x32xi1>
    %129 = vector.broadcast %128 : vector<128x32xi1> to vector<128x32xi1>
    %130 = arith.xori %126, %129 : vector<128x32xi1>
    %131 = arith.andi %130, %124 : vector<128x32xi1>
    %132 = vector.broadcast %120 : i32 to vector<128x32xi32>
    %133 = arith.addi %122, %132 : vector<128x32xi32>
    %134 = arith.select %131, %133, %122 : vector<128x32xi1>, vector<128x32xi32>
    %135 = arith.cmpi eq, %134, %118 : vector<128x32xi32>
    %136 = arith.extui %135 : vector<128x32xi1> to vector<128x32xi32>
    %137 = arith.sitofp %136 : vector<128x32xi32> to vector<128x32xf32>
    %c0_30 = arith.constant 0 : index
    %c0_31 = arith.constant 0 : index
    %138 = vector.load %arg5[%c0_30, %c0_31] : memref<16x128xf32, #tpu.memory_space<vmem>>, vector<16x128xf32>
    %cst_32 = arith.constant dense<0.000000e+00> : vector<16x32xf32>
    %139 = tpu.matmul %138, %137, %cst_32 {dimension_numbers = #tpu.dot_dimension_numbers<[1], [0], [0], [1], [0, 0, 1, 1], [], []>} : vector<16x128xf32>, vector<128x32xf32>, vector<16x32xf32> -> vector<16x32xf32>
    %c0_33 = arith.constant 0 : index
    %c32 = arith.constant 32 : index
    %140 = vector.load %arg4[%c0_33, %c32] : memref<16x64xf32, #tpu.memory_space<vmem>>, vector<16x32xf32>
    tpu.vector_store %arg4[%c0_33, %c32], %139 {strides = array<i32>} : memref<16x64xf32, #tpu.memory_space<vmem>>, vector<16x32xf32>,
    return
  }
}

</mosaic_0001>

<llo_original>
// kernel: gate_looped_attention.1
$region0: #{gate_looped_attention.1}
  #allocation0 [shape = 'u32[]', space=smem, size = 0x4, offset = 0x4, fixed_abs, tag = 'smem constant byte address 0x4 - core index']
  #allocation1 [shape = 'u32[72,128]{1,0:T(1,128)}', space=vmem, size = 0x9000, scoped, tag = 'internal scratch']
  #allocation2 [shape = 'f32[16,128]{1,0:T(8,128)}', space=vmem, size = 0x2000, scoped, tag = 'scratch operand']
  %s0 = inlined_call_operand.vmem [shape: f32[16,32], index: 0, kind: input, shape index: {}]
  %s1 = inlined_call_operand.vmem [shape: f32[1,32], index: 1, kind: input, shape index: {}]
  %s2 = inlined_call_operand.hbm [shape: f32[32,640], index: 2, kind: input, shape index: {}]
  %s3 = inlined_call_operand.vmem [shape: f32[1,640], index: 3, kind: input, shape index: {}]
  %s4 = inlined_call_operand.vmem [shape: f32[16,64], index: 4, kind: output, shape index: {}]
  %s5 = sld [smem:[#allocation0]]
  $region30: #{gate_looped_attention.1} parent=0
    _
  %s7 = ssub.s32 1, %s5
  %s8 = scalar_select 0, %s7, %s5
  $region1: #{gate_looped_attention.1} parent=0
    #allocation3 [shape = 'u8[81920]{0}', space=vmem, size = 0x14000, scoped, tag = 'input window, operand 2, single buffered']
    #allocation4 [shape = 's32[1]{0}', space=sflag, size = 0x4, scoped, tag = 'scoped memory for gate_looped_attention.1']
    %9 = vsyncpa [#allocation4], 0
    // Predicated region
    $region2: #{gate_looped_attention.1} parent=1 // pred_check
      _
    $region3: #{gate_looped_attention.1} parent=1 // pred_check_branch
      %11 = sbr.rel (0) target = $region5
    $region4: #{gate_looped_attention.1} parent=1 // pred_region
      _
    $region5: #{gate_looped_attention.1} parent=1 // pred_fallthru
      _
    // Predicated region
    $region6: #{gate_looped_attention.1} parent=1 // pred_check
      _
    $region7: #{gate_looped_attention.1} parent=1 // pred_check_branch
      %13 = sbr.rel (0) target = $region9
    $region8: #{gate_looped_attention.1} parent=1 // pred_region
      _
    $region9: #{gate_looped_attention.1} parent=1 // pred_fallthru
      _
    // Predicated region
    $region10: #{gate_looped_attention.1} parent=1 // pred_check
      _
    $region11: #{gate_looped_attention.1} parent=1 // pred_check_branch
      %15 = sbr.rel (0) target = $region13
    $region12: #{gate_looped_attention.1} parent=1 // pred_region
      %17 = vsyncadd [#allocation4], 0
      %s18 = sshll.u32 %s2, 4
      %s19 = int_to_ptr.hbm [resolvable:$true] %s18
      %s20 = sshll.u32 [#allocation3], 4
      %s21 = int_to_ptr.vmem [resolvable:$true] %s20
      %26 = dma.hbm_to_vmem [thread:$0]  %s19, 2560, %s21, [#allocation4], 640, 640, 40
    $region13: #{gate_looped_attention.1} parent=1 // pred_fallthru
      _
    // Predicated region
    $region14: #{gate_looped_attention.1} parent=1 // pred_check
      _
    $region15: #{gate_looped_attention.1} parent=1 // pred_check_branch
      %28 = sbr.rel (0) target = $region17
    $region16: #{gate_looped_attention.1} parent=1 // pred_region
      _
    $region17: #{gate_looped_attention.1} parent=1 // pred_fallthru
      _
    // Predicated region
    $region18: #{gate_looped_attention.1} parent=1 // pred_check
      _
    $region19: #{gate_looped_attention.1} parent=1 // pred_check_branch
      %30 = sbr.rel (0) target = $region21
    $region20: #{gate_looped_attention.1} parent=1 // pred_region
      %32 = dma.done [#allocation4], 2560
    $region21: #{gate_looped_attention.1} parent=1 // pred_fallthru
      _
    %v33 = vld [vmem:[%s0] sm:$0xff]
    %v34 = vld [vmem:[%s0 + $0x8] sm:$0xff]
    %v35 = vmul.f32 %v33, %v33
    %v36 = vmul.f32 %v34, %v34
    %vm37 = vcmask 261120
    %v38 = vsel %vm37, %v35, 0.0
    %39 = vadd.xlane.f32.xlu0 %v38
    %v40 = vpop.xlane.xlu0 %39
    %v41 = vsel %vm37, %v36, 0.0
    %42 = vadd.xlane.f32.xlu0 %v41
    %v43 = vpop.xlane.xlu0 %42
    %v44 = vrsqrt.pop %v40
    %v45 = vmul.f32 %v44, %v40
    %v46 = vmul.f32 %v45, %v44
    %v47 = vmul.f32 0.5, %v46
    %v48 = vsub.f32 1.5, %v47
    %v49 = vmul.f32 %v44, %v48
    %v50 = vmul.f32 %v40, %v49
    %vm51 = vcmp.eq.f32.partialorder %v40, inf
    %v52 = vsel %vm51, %v40, %v50
    %vm53 = vcmp.eq.f32.partialorder %v40, 0.0
    %v54 = vand.u32 %v40, 2147483648
    %v55 = vsel %vm53, %v54, %v52
    %v56 = vrsqrt.pop %v43
    %v57 = vmul.f32 %v56, %v43
    %v58 = vmul.f32 %v57, %v56
    %v59 = vmul.f32 0.5, %v58
    %v60 = vsub.f32 1.5, %v59
    %v61 = vmul.f32 %v56, %v60
    %v62 = vmul.f32 %v43, %v61
    %vm63 = vcmp.eq.f32.partialorder %v43, inf
    %v64 = vsel %vm63, %v43, %v62
    %vm65 = vcmp.eq.f32.partialorder %v43, 0.0
    %v66 = vand.u32 %v43, 2147483648
    %v67 = vsel %vm65, %v66, %v64
    %v68 = vmax.f32 %v55, 1e-12
    %v69 = vmax.f32 %v67, 1e-12
    %v70 = vrcp.pop %v68
    %v71 = vmul.f32 %v68, %v70
    %v72 = vsub.f32 1.0, %v71
    %v73 = vmul.f32 %v70, %v72
    %v74 = vadd.f32 %v70, %v73
    %vm75 = vweird.f32 %v68
    %vm76 = vweird.f32 %v70
    %vm77 = vmor %vm75, %vm76
    %v78 = vsel %vm77, %v70, %v74
    %v79 = vand.u32 2147483647, %v68
    %vm80 = vcmp.eq.f32.partialorder %v79, 8.507059e+37
    %v81 = vand.u32 %v68, 2147483648
    %v82 = vor.u32 1.1754944e-38, %v81
    %v83 = vsel %vm80, %v82, %v78
    %v84 = vmul.f32 %v33, %v83
    %v85 = vrcp.pop %v69
    %v86 = vmul.f32 %v69, %v85
    %v87 = vsub.f32 1.0, %v86
    %v88 = vmul.f32 %v85, %v87
    %v89 = vadd.f32 %v85, %v88
    %vm90 = vweird.f32 %v69
    %vm91 = vweird.f32 %v85
    %vm92 = vmor %vm90, %vm91
    %v93 = vsel %vm92, %v85, %v89
    %v94 = vand.u32 2147483647, %v69
    %vm95 = vcmp.eq.f32.partialorder %v94, 8.507059e+37
    %v96 = vand.u32 %v69, 2147483648
    %v97 = vor.u32 1.1754944e-38, %v96
    %v98 = vsel %vm95, %v97, %v93
    %v99 = vmul.f32 %v34, %v98
    %v100 = vmul.f32 %v84, 5.656854
    %v101 = vmul.f32 %v99, 5.656854
    %v102 = vld [vmem:[%s1] sm:$0x1]
    %v104 = vperm.slane %v102, 0
    %v106 = vmul.f32 %v100, %v104
    %v107 = vmul.f32 %v101, %v104
    %108 = vst.msk [vmem:[%s4] sm:$0xff] %vm37, %v106
    %109 = vst.msk [vmem:[%s4 + $0x8] sm:$0xff] %vm37, %v107
    %v110 = vld [vmem:[#allocation3] sm:$0xff]
    %v111 = vld [vmem:[#allocation3 + $0x8] sm:$0xff]
    %v112 = vld [vmem:[#allocation3 + $0x10] sm:$0xff]
    %v113 = vld [vmem:[#allocation3 + $0x18] sm:$0xff]
    %v114 = vld [vmem:[#allocation3 + $0x20] sm:$0xff]
    %v115 = vld [vmem:[#allocation3 + $0x28] sm:$0xff]
    %v116 = vld [vmem:[#allocation3 + $0x30] sm:$0xff]
    %v117 = vld [vmem:[#allocation3 + $0x38] sm:$0xff]
    %v118 = vld [vmem:[#allocation3 + $0x40] sm:$0xff]
    %v119 = vld [vmem:[#allocation3 + $0x48] sm:$0xff]
    %v120 = vld [vmem:[#allocation3 + $0x50] sm:$0xff]
    %v121 = vld [vmem:[#allocation3 + $0x58] sm:$0xff]
    %v122 = vld [vmem:[#allocation3 + $0x60] sm:$0xff]
    %v123 = vld [vmem:[#allocation3 + $0x68] sm:$0xff]
    %v124 = vld [vmem:[#allocation3 + $0x70] sm:$0xff]
    %v125 = vld [vmem:[#allocation3 + $0x78] sm:$0xff]
    %v126 = vld [vmem:[#allocation3 + $0x80] sm:$0xff]
    %v127 = vld [vmem:[#allocation3 + $0x88] sm:$0xff]
    %v128 = vld [vmem:[#allocation3 + $0x90] sm:$0xff]
    %v129 = vld [vmem:[#allocation3 + $0x98] sm:$0xff]
    %v130 = vld [vmem:[%s3] sm:$0x1f]
    %v132 = vperm.slane %v130, 0
    %v133 = vperm.slane %v130, 1
    %v134 = vperm.slane %v130, 2
    %v135 = vperm.slane %v130, 3
    %v136 = vperm.slane %v130, 4
    %v143 = vsel %vm37, %v106, 0
    %v146 = vsel %vm37, %v107, 0
    %148 = vmatpush.msra.mxu0 0.0
    %149 = vmatpush.msra.mxu0 0.0
    %150 = vmatpush.msra.mxu0 0.0
    %151 = vmatpush.msra.mxu0 0.0
    %152 = vmatpush.msra.mxu0 0.0
    %153 = vmatpush.msra.mxu0 0.0
    %154 = vmatpush.msra.mxu0 0.0
    %155 = vmatpush.msra.mxu0 0.0
    %156 = vmatpush.msra.mxu0 0.0
    %157 = vmatpush.msra.mxu0 0.0
    %158 = vmatpush.msra.mxu0 0.0
    %159 = vmatpush.msra.mxu0 0.0
    %160 = vmatpush.msra.mxu0 %v125
    %161 = vmatpush.msra.mxu0 %v120
    %162 = vmatpush.msra.mxu0 %v115
    %163 = vmatpush.msra.mxu0 %v110
    %164 = vmatmul.f32.gmra.mxu0 %v143
    %v165 = vpop.f32.mrf.mxu0
    %v166 = vadd.f32 %v132, %v165
    %167 = vmatmul.f32.gmra.mxu0 %v146
    %v168 = vpop.f32.mrf.mxu0
    %v169 = vadd.f32 %v132, %v168
    %170 = vdwg.mxu0
    %171 = vmatpush.msra.mxu0 0.0
    %172 = vmatpush.msra.mxu0 0.0
    %173 = vmatpush.msra.mxu0 0.0
    %174 = vmatpush.msra.mxu0 0.0
    %175 = vmatpush.msra.mxu0 0.0
    %176 = vmatpush.msra.mxu0 0.0
    %177 = vmatpush.msra.mxu0 0.0
    %178 = vmatpush.msra.mxu0 0.0
    %179 = vmatpush.msra.mxu0 0.0
    %180 = vmatpush.msra.mxu0 0.0
    %181 = vmatpush.msra.mxu0 0.0
    %182 = vmatpush.msra.mxu0 0.0
    %183 = vmatpush.msra.mxu0 %v126
    %184 = vmatpush.msra.mxu0 %v121
    %185 = vmatpush.msra.mxu0 %v116
    %186 = vmatpush.msra.mxu0 %v111
    %187 = vmatmul.f32.gmra.mxu0 %v143
    %v188 = vpop.f32.mrf.mxu0
    %v189 = vadd.f32 %v133, %v188
    %190 = vmatmul.f32.gmra.mxu0 %v146
    %v191 = vpop.f32.mrf.mxu0
    %v192 = vadd.f32 %v133, %v191
    %193 = vdwg.mxu0
    %194 = vmatpush.msra.mxu0 0.0
    %195 = vmatpush.msra.mxu0 0.0
    %196 = vmatpush.msra.mxu0 0.0
    %197 = vmatpush.msra.mxu0 0.0
    %198 = vmatpush.msra.mxu0 0.0
    %199 = vmatpush.msra.mxu0 0.0
    %200 = vmatpush.msra.mxu0 0.0
    %201 = vmatpush.msra.mxu0 0.0
    %202 = vmatpush.msra.mxu0 0.0
    %203 = vmatpush.msra.mxu0 0.0
    %204 = vmatpush.msra.mxu0 0.0
    %205 = vmatpush.msra.mxu0 0.0
    %206 = vmatpush.msra.mxu0 %v127
    %207 = vmatpush.msra.mxu0 %v122
    %208 = vmatpush.msra.mxu0 %v117
    %209 = vmatpush.msra.mxu0 %v112
    %210 = vmatmul.f32.gmra.mxu0 %v143
    %v211 = vpop.f32.mrf.mxu0
    %v212 = vadd.f32 %v134, %v211
    %213 = vmatmul.f32.gmra.mxu0 %v146
    %v214 = vpop.f32.mrf.mxu0
    %v215 = vadd.f32 %v134, %v214
    %216 = vdwg.mxu0
    %217 = vmatpush.msra.mxu0 0.0
    %218 = vmatpush.msra.mxu0 0.0
    %219 = vmatpush.msra.mxu0 0.0
    %220 = vmatpush.msra.mxu0 0.0
    %221 = vmatpush.msra.mxu0 0.0
    %222 = vmatpush.msra.mxu0 0.0
    %223 = vmatpush.msra.mxu0 0.0
    %224 = vmatpush.msra.mxu0 0.0
    %225 = vmatpush.msra.mxu0 0.0
    %226 = vmatpush.msra.mxu0 0.0
    %227 = vmatpush.msra.mxu0 0.0
    %228 = vmatpush.msra.mxu0 0.0
    %229 = vmatpush.msra.mxu0 %v128
    %230 = vmatpush.msra.mxu0 %v123
    %231 = vmatpush.msra.mxu0 %v118
    %232 = vmatpush.msra.mxu0 %v113
    %233 = vmatmul.f32.gmra.mxu0 %v143
    %v234 = vpop.f32.mrf.mxu0
    %v235 = vadd.f32 %v135, %v234
    %236 = vmatmul.f32.gmra.mxu0 %v146
    %v237 = vpop.f32.mrf.mxu0
    %v238 = vadd.f32 %v135, %v237
    %239 = vdwg.mxu0
    %240 = vmatpush.msra.mxu0 0.0
    %241 = vmatpush.msra.mxu0 0.0
    %242 = vmatpush.msra.mxu0 0.0
    %243 = vmatpush.msra.mxu0 0.0
    %244 = vmatpush.msra.mxu0 0.0
    %245 = vmatpush.msra.mxu0 0.0
    %246 = vmatpush.msra.mxu0 0.0
    %247 = vmatpush.msra.mxu0 0.0
    %248 = vmatpush.msra.mxu0 0.0
    %249 = vmatpush.msra.mxu0 0.0
    %250 = vmatpush.msra.mxu0 0.0
    %251 = vmatpush.msra.mxu0 0.0
    %252 = vmatpush.msra.mxu0 %v129
    %253 = vmatpush.msra.mxu0 %v124
    %254 = vmatpush.msra.mxu0 %v119
    %255 = vmatpush.msra.mxu0 %v114
    %256 = vmatmul.f32.gmra.mxu0 %v143
    %v257 = vpop.f32.mrf.mxu0
    %v258 = vadd.f32 %v136, %v257
    %259 = vmatmul.f32.gmra.mxu0 %v146
    %v260 = vpop.f32.mrf.mxu0
    %v261 = vadd.f32 %v136, %v260
    %262 = vdwg.mxu0
    %v263 = vmul.f32 %v235, %v235
    %v264 = vmul.f32 %v238, %v238
    %v265 = vmul.f32 %v258, %v258
    %v266 = vmul.f32 %v261, %v261
    %v267 = vadd.f32 %v263, %v265
    %v268 = vadd.f32 %v264, %v266
    %v269 = vrsqrt.pop %v267
    %v270 = vmul.f32 %v269, %v267
    %v271 = vmul.f32 %v270, %v269
    %v272 = vmul.f32 0.5, %v271
    %v273 = vsub.f32 1.5, %v272
    %v274 = vmul.f32 %v269, %v273
    %v275 = vmul.f32 %v267, %v274
    %vm276 = vcmp.eq.f32.partialorder %v267, inf
    %v277 = vsel %vm276, %v267, %v275
    %vm278 = vcmp.eq.f32.partialorder %v267, 0.0
    %v279 = vand.u32 %v267, 2147483648
    %v280 = vsel %vm278, %v279, %v277
    %v281 = vrsqrt.pop %v268
    %v282 = vmul.f32 %v281, %v268
    %v283 = vmul.f32 %v282, %v281
    %v284 = vmul.f32 0.5, %v283
    %v285 = vsub.f32 1.5, %v284
    %v286 = vmul.f32 %v281, %v285
    %v287 = vmul.f32 %v268, %v286
    %vm288 = vcmp.eq.f32.partialorder %v268, inf
    %v289 = vsel %vm288, %v268, %v287
    %vm290 = vcmp.eq.f32.partialorder %v268, 0.0
    %v291 = vand.u32 %v268, 2147483648
    %v292 = vsel %vm290, %v291, %v289
    %vm293 = vcmp.gt.f32.partialorder %v280, 0.0
    %vm294 = vcmp.gt.f32.partialorder %v292, 0.0
    %v295 = vsel %vm293, %v280, 1.0
    %v296 = vsel %vm294, %v292, 1.0
    %v297 = vrcp.pop %v295
    %v298 = vmul.f32 %v295, %v297
    %v299 = vsub.f32 1.0, %v298
    %v300 = vmul.f32 %v297, %v299
    %v301 = vadd.f32 %v297, %v300
    %vm302 = vweird.f32 %v295
    %vm303 = vweird.f32 %v297
    %vm304 = vmor %vm302, %vm303
    %v305 = vsel %vm304, %v297, %v301
    %v306 = vand.u32 2147483647, %v295
    %vm307 = vcmp.eq.f32.partialorder %v306, 8.507059e+37
    %v308 = vand.u32 %v295, 2147483648
    %v309 = vor.u32 1.1754944e-38, %v308
    %v310 = vsel %vm307, %v309, %v305
    %v311 = vmul.f32 %v235, %v310
    %v312 = vrcp.pop %v296
    %v313 = vmul.f32 %v296, %v312
    %v314 = vsub.f32 1.0, %v313
    %v315 = vmul.f32 %v312, %v314
    %v316 = vadd.f32 %v312, %v315
    %vm317 = vweird.f32 %v296
    %vm318 = vweird.f32 %v312
    %vm319 = vmor %vm317, %vm318
    %v320 = vsel %vm319, %v312, %v316
    %v321 = vand.u32 2147483647, %v296
    %vm322 = vcmp.eq.f32.partialorder %v321, 8.507059e+37
    %v323 = vand.u32 %v296, 2147483648
    %v324 = vor.u32 1.1754944e-38, %v323
    %v325 = vsel %vm322, %v324, %v320
    %v326 = vmul.f32 %v238, %v325
    %v327 = vsel %vm293, %v311, 1.0
    %v328 = vsel %vm294, %v326, 1.0
    %v329 = vxor.u32 %v280, 2147483648
    %v330 = vxor.u32 %v292, 2147483648
    %v331 = vmul.f32 %v329, 1.442695
    %v332 = vpow.pop %v331
    %v333 = vmul.f32 %v330, 1.442695
    %v334 = vpow.pop %v333
    %v335 = vadd.f32 %v332, 1.0
    %v336 = vadd.f32 %v334, 1.0
    %v337 = vrcp.pop %v335
    %v338 = vmul.f32 %v335, %v337
    %v339 = vsub.f32 1.0, %v338
    %v340 = vmul.f32 %v337, %v339
    %v341 = vadd.f32 %v337, %v340
    %vm342 = vweird.f32 %v335
    %vm343 = vweird.f32 %v337
    %vm344 = vmor %vm342, %vm343
    %v345 = vsel %vm344, %v337, %v341
    %v346 = vand.u32 2147483647, %v335
    %vm347 = vcmp.eq.f32.partialorder %v346, 8.507059e+37
    %v348 = vand.u32 %v335, 2147483648
    %v349 = vor.u32 1.1754944e-38, %v348
    %v350 = vsel %vm347, %v349, %v345
    %v351 = vmul.f32 1.0, %v350
    %v352 = vrcp.pop %v336
    %v353 = vmul.f32 %v336, %v352
    %v354 = vsub.f32 1.0, %v353
    %v355 = vmul.f32 %v352, %v354
    %v356 = vadd.f32 %v352, %v355
    %vm357 = vweird.f32 %v336
    %vm358 = vweird.f32 %v352
    %vm359 = vmor %vm357, %vm358
    %v360 = vsel %vm359, %v352, %v356
    %v361 = vand.u32 2147483647, %v336
    %vm362 = vcmp.eq.f32.partialorder %v361, 8.507059e+37
    %v363 = vand.u32 %v336, 2147483648
    %v364 = vor.u32 1.1754944e-38, %v363
    %v365 = vsel %vm362, %v364, %v360
    %v366 = vmul.f32 1.0, %v365
    %v367 = vmul.f32 %v351, %v327
    %v368 = vmul.f32 %v366, %v328
    %v369 = vmul.f32 %v367, 0.0
    %v370 = vmul.f32 %v189, %v212
    %v371 = vadd.f32 %v369, %v370
    %v372 = vmul.f32 %v166, %v371
    %373 = vst [vmem:[#allocation2] sm:$0x3] %v372
    %v375 = vrot.slane %v371, 6
    %v377 = vmul.f32 %v367, %v375
    %v378 = vadd.f32 %v377, %v370
    %v379 = vmul.f32 %v166, %v378
    %380 = vst [vmem:[#allocation2] sm:$0xc] %v379
    %v382 = vrot.slane %v378, 6
    %v384 = vmul.f32 %v367, %v382
    %v385 = vadd.f32 %v384, %v370
    %v386 = vmul.f32 %v166, %v385
    %387 = vst [vmem:[#allocation2] sm:$0x30] %v386
    %v389 = vrot.slane %v385, 6
    %v391 = vmul.f32 %v367, %v389
    %v392 = vadd.f32 %v391, %v370
    %v393 = vmul.f32 %v166, %v392
    %394 = vst [vmem:[#allocation2] sm:$0xc0] %v393
    %v396 = vrot.slane %v392, 6
    %v398 = vmul.f32 %v368, %v396
    %v399 = vmul.f32 %v192, %v215
    %v400 = vadd.f32 %v398, %v399
    %v401 = vmul.f32 %v169, %v400
    %402 = vst [vmem:[#allocation2 + $0x8] sm:$0x3] %v401
    %v404 = vrot.slane %v400, 6
    %v406 = vmul.f32 %v368, %v404
    %v407 = vadd.f32 %v406, %v399
    %v408 = vmul.f32 %v169, %v407
    %409 = vst [vmem:[#allocation2 + $0x8] sm:$0xc] %v408
    %v411 = vrot.slane %v407, 6
    %v413 = vmul.f32 %v368, %v411
    %v414 = vadd.f32 %v413, %v399
    %v415 = vmul.f32 %v169, %v414
    %416 = vst [vmem:[#allocation2 + $0x8] sm:$0x30] %v415
    %v418 = vrot.slane %v414, 6
    %v420 = vmul.f32 %v368, %v418
    %v421 = vadd.f32 %v420, %v399
    %v422 = vmul.f32 %v169, %v421
    %423 = vst [vmem:[#allocation2 + $0x8] sm:$0xc0] %v422
    %v424 = vlaneseq
    %v425 = vshrl.u32 %v424, 7
    %v426 = vadd.s32 %v425, 8
    %v427 = vadd.s32 %v425, 16
    %v428 = vadd.s32 %v425, 24
    %v429 = vadd.s32 %v425, 32
    %v430 = vadd.s32 %v425, 40
    %v431 = vadd.s32 %v425, 48
    %v432 = vadd.s32 %v425, 56
    %v433 = vadd.s32 %v425, 64
    %v434 = vadd.s32 %v425, 72
    %v435 = vadd.s32 %v425, 80
    %v436 = vadd.s32 %v425, 88
    %v437 = vadd.s32 %v425, 96
    %v438 = vadd.s32 %v425, 104
    %v439 = vadd.s32 %v425, 112
    %v440 = vadd.s32 %v425, 120
    %v441 = vlaneseq
    %v442 = vand.u32 %v441, 127
    %vm443 = vcmp.lt.s32.totalorder %v425, 0
    %v444 = vsub.s32 0, %v425
    %v445 = vsel %vm443, %v444, %v425
    %v446 = vshrl.u32 %v445, 5
    %v447 = vand.u32 %v445, 31
    %v448 = vsub.s32 0, %v447
    %v449 = vsel %vm443, %v448, %v447
    %vm450 = vcmp.lt.s32.totalorder %v426, 0
    %v451 = vsub.s32 0, %v426
    %v452 = vsel %vm450, %v451, %v426
    %v453 = vshrl.u32 %v452, 5
    %v454 = vand.u32 %v452, 31
    %v455 = vsub.s32 0, %v454
    %v456 = vsel %vm450, %v455, %v454
    %vm457 = vcmp.lt.s32.totalorder %v427, 0
    %v458 = vsub.s32 0, %v427
    %v459 = vsel %vm457, %v458, %v427
    %v460 = vshrl.u32 %v459, 5
    %v461 = vand.u32 %v459, 31
    %v462 = vsub.s32 0, %v461
    %v463 = vsel %vm457, %v462, %v461
    %vm464 = vcmp.lt.s32.totalorder %v428, 0
    %v465 = vsub.s32 0, %v428
    %v466 = vsel %vm464, %v465, %v428
    %v467 = vshrl.u32 %v466, 5
    %v468 = vand.u32 %v466, 31
    %v469 = vsub.s32 0, %v468
    %v470 = vsel %vm464, %v469, %v468
    %vm471 = vcmp.lt.s32.totalorder %v429, 0
    %v472 = vsub.s32 0, %v429
    %v473 = vsel %vm471, %v472, %v429
    %v474 = vshrl.u32 %v473, 5
    %v475 = vand.u32 %v473, 31
    %v476 = vsub.s32 0, %v475
    %v477 = vsel %vm471, %v476, %v475
    %vm478 = vcmp.lt.s32.totalorder %v430, 0
    %v479 = vsub.s32 0, %v430
    %v480 = vsel %vm478, %v479, %v430
    %v481 = vshrl.u32 %v480, 5
    %v482 = vand.u32 %v480, 31
    %v483 = vsub.s32 0, %v482
    %v484 = vsel %vm478, %v483, %v482
    %vm485 = vcmp.lt.s32.totalorder %v431, 0
    %v486 = vsub.s32 0, %v431
    %v487 = vsel %vm485, %v486, %v431
    %v488 = vshrl.u32 %v487, 5
    %v489 = vand.u32 %v487, 31
    %v490 = vsub.s32 0, %v489
    %v491 = vsel %vm485, %v490, %v489
    %vm492 = vcmp.lt.s32.totalorder %v432, 0
    %v493 = vsub.s32 0, %v432
    %v494 = vsel %vm492, %v493, %v432
    %v495 = vshrl.u32 %v494, 5
    %v496 = vand.u32 %v494, 31
    %v497 = vsub.s32 0, %v496
    %v498 = vsel %vm492, %v497, %v496
    %vm499 = vcmp.lt.s32.totalorder %v433, 0
    %v500 = vsub.s32 0, %v433
    %v501 = vsel %vm499, %v500, %v433
    %v502 = vshrl.u32 %v501, 5
    %v503 = vand.u32 %v501, 31
    %v504 = vsub.s32 0, %v503
    %v505 = vsel %vm499, %v504, %v503
    %vm506 = vcmp.lt.s32.totalorder %v434, 0
    %v507 = vsub.s32 0, %v434
    %v508 = vsel %vm506, %v507, %v434
    %v509 = vshrl.u32 %v508, 5
    %v510 = vand.u32 %v508, 31
    %v511 = vsub.s32 0, %v510
    %v512 = vsel %vm506, %v511, %v510
    %vm513 = vcmp.lt.s32.totalorder %v435, 0
    %v514 = vsub.s32 0, %v435
    %v515 = vsel %vm513, %v514, %v435
    %v516 = vshrl.u32 %v515, 5
    %v517 = vand.u32 %v515, 31
    %v518 = vsub.s32 0, %v517
    %v519 = vsel %vm513, %v518, %v517
    %vm520 = vcmp.lt.s32.totalorder %v436, 0
    %v521 = vsub.s32 0, %v436
    %v522 = vsel %vm520, %v521, %v436
    %v523 = vshrl.u32 %v522, 5
    %v524 = vand.u32 %v522, 31
    %v525 = vsub.s32 0, %v524
    %v526 = vsel %vm520, %v525, %v524
    %vm527 = vcmp.lt.s32.totalorder %v437, 0
    %v528 = vsub.s32 0, %v437
    %v529 = vsel %vm527, %v528, %v437
    %v530 = vshrl.u32 %v529, 5
    %v531 = vand.u32 %v529, 31
    %v532 = vsub.s32 0, %v531
    %v533 = vsel %vm527, %v532, %v531
    %vm534 = vcmp.lt.s32.totalorder %v438, 0
    %v535 = vsub.s32 0, %v438
    %v536 = vsel %vm534, %v535, %v438
    %v537 = vshrl.u32 %v536, 5
    %v538 = vand.u32 %v536, 31
    %v539 = vsub.s32 0, %v538
    %v540 = vsel %vm534, %v539, %v538
    %vm541 = vcmp.lt.s32.totalorder %v439, 0
    %v542 = vsub.s32 0, %v439
    %v543 = vsel %vm541, %v542, %v439
    %v544 = vshrl.u32 %v543, 5
    %v545 = vand.u32 %v543, 31
    %v546 = vsub.s32 0, %v545
    %v547 = vsel %vm541, %v546, %v545
    %vm548 = vcmp.lt.s32.totalorder %v440, 0
    %v549 = vsub.s32 0, %v440
    %v550 = vsel %vm548, %v549, %v440
    %v551 = vshrl.u32 %v550, 5
    %v552 = vand.u32 %v550, 31
    %v553 = vsub.s32 0, %v552
    %v554 = vsel %vm548, %v553, %v552
    %vm555 = vcmp.ne.s32.totalorder %v449, 0
    %vm556 = vcmp.ne.s32.totalorder %v456, 0
    %vm557 = vcmp.ne.s32.totalorder %v463, 0
    %vm558 = vcmp.ne.s32.totalorder %v470, 0
    %vm559 = vcmp.ne.s32.totalorder %v477, 0
    %vm560 = vcmp.ne.s32.totalorder %v484, 0
    %vm561 = vcmp.ne.s32.totalorder %v491, 0
    %vm562 = vcmp.ne.s32.totalorder %v498, 0
    %vm563 = vcmp.ne.s32.totalorder %v505, 0
    %vm564 = vcmp.ne.s32.totalorder %v512, 0
    %vm565 = vcmp.ne.s32.totalorder %v519, 0
    %vm566 = vcmp.ne.s32.totalorder %v526, 0
    %vm567 = vcmp.ne.s32.totalorder %v533, 0
    %vm568 = vcmp.ne.s32.totalorder %v540, 0
    %vm569 = vcmp.ne.s32.totalorder %v547, 0
    %vm570 = vcmp.ne.s32.totalorder %v554, 0
    %vm571 = vcmp.lt.s32.totalorder %v449, 0
    %vm572 = vcmp.lt.s32.totalorder %v456, 0
    %vm573 = vcmp.lt.s32.totalorder %v463, 0
    %vm574 = vcmp.lt.s32.totalorder %v470, 0
    %vm575 = vcmp.lt.s32.totalorder %v477, 0
    %vm576 = vcmp.lt.s32.totalorder %v484, 0
    %vm577 = vcmp.lt.s32.totalorder %v491, 0
    %vm578 = vcmp.lt.s32.totalorder %v498, 0
    %vm579 = vcmp.lt.s32.totalorder %v505, 0
    %vm580 = vcmp.lt.s32.totalorder %v512, 0
    %vm581 = vcmp.lt.s32.totalorder %v519, 0
    %vm582 = vcmp.lt.s32.totalorder %v526, 0
    %vm583 = vcmp.lt.s32.totalorder %v533, 0
    %vm584 = vcmp.lt.s32.totalorder %v540, 0
    %vm585 = vcmp.lt.s32.totalorder %v547, 0
    %vm586 = vcmp.lt.s32.totalorder %v554, 0
    %vm587 = vmand %vm571, %vm555
    %vm588 = vmand %vm572, %vm556
    %vm589 = vmand %vm573, %vm557
    %vm590 = vmand %vm574, %vm558
    %vm591 = vmand %vm575, %vm559
    %vm592 = vmand %vm576, %vm560
    %vm593 = vmand %vm577, %vm561
    %vm594 = vmand %vm578, %vm562
    %vm595 = vmand %vm579, %vm563
    %vm596 = vmand %vm580, %vm564
    %vm597 = vmand %vm581, %vm565
    %vm598 = vmand %vm582, %vm566
    %vm599 = vmand %vm583, %vm567
    %vm600 = vmand %vm584, %vm568
    %vm601 = vmand %vm585, %vm569
    %vm602 = vmand %vm586, %vm570
    %v603 = vadd.s32 %v449, 32
    %v604 = vadd.s32 %v456, 32
    %v605 = vadd.s32 %v463, 32
    %v606 = vadd.s32 %v470, 32
    %v607 = vadd.s32 %v477, 32
    %v608 = vadd.s32 %v484, 32
    %v609 = vadd.s32 %v491, 32
    %v610 = vadd.s32 %v498, 32
    %v611 = vadd.s32 %v505, 32
    %v612 = vadd.s32 %v512, 32
    %v613 = vadd.s32 %v519, 32
    %v614 = vadd.s32 %v526, 32
    %v615 = vadd.s32 %v533, 32
    %v616 = vadd.s32 %v540, 32
    %v617 = vadd.s32 %v547, 32
    %v618 = vadd.s32 %v554, 32
    %v619 = vsel %vm587, %v603, %v449
    %v620 = vsel %vm588, %v604, %v456
    %v621 = vsel %vm589, %v605, %v463
    %v622 = vsel %vm590, %v606, %v470
    %v623 = vsel %vm591, %v607, %v477
    %v624 = vsel %vm592, %v608, %v484
    %v625 = vsel %vm593, %v609, %v491
    %v626 = vsel %vm594, %v610, %v498
    %v627 = vsel %vm595, %v611, %v505
    %v628 = vsel %vm596, %v612, %v512
    %v629 = vsel %vm597, %v613, %v519
    %v630 = vsel %vm598, %v614, %v526
    %v631 = vsel %vm599, %v615, %v533
    %v632 = vsel %vm600, %v616, %v540
    %v633 = vsel %vm601, %v617, %v547
    %v634 = vsel %vm602, %v618, %v554
    %vm635 = vcmp.eq.s32.totalorder %v619, %v442
    %vm636 = vcmp.eq.s32.totalorder %v620, %v442
    %vm637 = vcmp.eq.s32.totalorder %v621, %v442
    %vm638 = vcmp.eq.s32.totalorder %v622, %v442
    %vm639 = vcmp.eq.s32.totalorder %v623, %v442
    %vm640 = vcmp.eq.s32.totalorder %v624, %v442
    %vm641 = vcmp.eq.s32.totalorder %v625, %v442
    %vm642 = vcmp.eq.s32.totalorder %v626, %v442
    %vm643 = vcmp.eq.s32.totalorder %v627, %v442
    %vm644 = vcmp.eq.s32.totalorder %v628, %v442
    %vm645 = vcmp.eq.s32.totalorder %v629, %v442
    %vm646 = vcmp.eq.s32.totalorder %v630, %v442
    %vm647 = vcmp.eq.s32.totalorder %v631, %v442
    %vm648 = vcmp.eq.s32.totalorder %v632, %v442
    %vm649 = vcmp.eq.s32.totalorder %v633, %v442
    %vm650 = vcmp.eq.s32.totalorder %v634, %v442
    %v651 = vsel %vm635, 1, 0
    %v652 = vsel %vm636, 1, 0
    %v653 = vsel %vm637, 1, 0
    %v654 = vsel %vm638, 1, 0
    %v655 = vsel %vm639, 1, 0
    %v656 = vsel %vm640, 1, 0
    %v657 = vsel %vm641, 1, 0
    %v658 = vsel %vm642, 1, 0
    %v659 = vsel %vm643, 1, 0
    %v660 = vsel %vm644, 1, 0
    %v661 = vsel %vm645, 1, 0
    %v662 = vsel %vm646, 1, 0
    %v663 = vsel %vm647, 1, 0
    %v664 = vsel %vm648, 1, 0
    %v665 = vsel %vm649, 1, 0
    %v666 = vsel %vm650, 1, 0
    %v667 = vcvt.s32.f32 %v651
    %v668 = vcvt.s32.f32 %v652
    %v669 = vcvt.s32.f32 %v653
    %v670 = vcvt.s32.f32 %v654
    %v671 = vcvt.s32.f32 %v655
    %v672 = vcvt.s32.f32 %v656
    %v673 = vcvt.s32.f32 %v657
    %v674 = vcvt.s32.f32 %v658
    %v675 = vcvt.s32.f32 %v659
    %v676 = vcvt.s32.f32 %v660
    %v677 = vcvt.s32.f32 %v661
    %v678 = vcvt.s32.f32 %v662
    %v679 = vcvt.s32.f32 %v663
    %v680 = vcvt.s32.f32 %v664
    %v681 = vcvt.s32.f32 %v665
    %v682 = vcvt.s32.f32 %v666
    %v683 = vld [vmem:[#allocation2] sm:$0xff]
    %v684 = vld [vmem:[#allocation2 + $0x8] sm:$0xff]
    %685 = vmatpush.msra.mxu0 %v682
    %686 = vmatpush.msra.mxu0 %v681
    %687 = vmatpush.msra.mxu0 %v680
    %688 = vmatpush.msra.mxu0 %v679
    %689 = vmatpush.msra.mxu0 %v678
    %690 = vmatpush.msra.mxu0 %v677
    %691 = vmatpush.msra.mxu0 %v676
    %692 = vmatpush.msra.mxu0 %v675
    %693 = vmatpush.msra.mxu0 %v674
    %694 = vmatpush.msra.mxu0 %v673
    %695 = vmatpush.msra.mxu0 %v672
    %696 = vmatpush.msra.mxu0 %v671
    %697 = vmatpush.msra.mxu0 %v670
    %698 = vmatpush.msra.mxu0 %v669
    %699 = vmatpush.msra.mxu0 %v668
    %700 = vmatpush.msra.mxu0 %v667
    %701 = vmatmul.f32.gmra.mxu0 %v683
    %v702 = vpop.f32.mrf.mxu0
    %v703 = vadd.f32 0.0, %v702
    %704 = vmatmul.f32.gmra.mxu0 %v684
    %v705 = vpop.f32.mrf.mxu0
    %v706 = vadd.f32 0.0, %v705
    %707 = vdwg.mxu0
    %710 = vrot.lane.b32.xlu0 %v703, 32
    %v711 = vpop.permute.xlu0 %710
    %712 = vrot.lane.b32.xlu0 %v706, 32
    %v713 = vpop.permute.xlu0 %712
    %vm716 = vcmask 523520
    %717 = vst.msk [vmem:[%s4] sm:$0xff] %vm716, %v711
    %718 = vst.msk [vmem:[%s4 + $0x8] sm:$0xff] %vm716, %v713
    // Predicated region
    $region22: #{gate_looped_attention.1} parent=1 // pred_check
      _
    $region23: #{gate_looped_attention.1} parent=1 // pred_check_branch
      %720 = sbr.rel (0) target = $region25
    $region24: #{gate_looped_attention.1} parent=1 // pred_region
      _
    $region25: #{gate_looped_attention.1} parent=1 // pred_fallthru
      _
    // Predicated region
    $region26: #{gate_looped_attention.1} parent=1 // pred_check
      _
    $region27: #{gate_looped_attention.1} parent=1 // pred_check_branch
      %722 = sbr.rel (0) target = $region29
    $region28: #{gate_looped_attention.1} parent=1 // pred_region
      _
    $region29: #{gate_looped_attention.1} parent=1 // pred_fallthru
      _
    %723 = vsyncpa [#allocation4], 1

</llo_original>
